<compile_context>
chip_gen: v6e
topology: v6e:2x2x1
jax: 0.10.0
libtpu: 0.0.40
codegen_flags: <defaults>
</compile_context>

<pallas_src>
import functools

import jax
import jax.numpy as jnp
from jax.experimental import pallas as pl
from jax.experimental.pallas import tpu as pltpu

_IN = 8      # Linear in_features
_OUT = 4     # Linear out_features
_LANE = 128
_PALLAS_MIN_BATCH = 1024   # below this, plain XLA wins (launch + lane padding)


def _beta_extractor_kernel(x_ref, w_ref, b_ref, o_ref):
    x = x_ref[...]          # (8, TB)  f32 -- batch on lanes
    w = w_ref[...]          # (4, 8)   f32 -- torch (out, in) layout
    b = b_ref[...]          # (4, 1)   f32
    # out[o, :] = b[o] + sum_k w[o, k] * x[k, :] -- 8 VPU broadcast FMAs,
    # statically unrolled (kernel is HBM-bound; VPU/EUP work is free filler).
    acc = w[:, 0:1] * x[0:1, :] + b                   # (4, TB)
    for k in range(1, _IN):
        acc = acc + w[:, k:k + 1] * x[k:k + 1, :]
    # softplus(z) = max(z, 0) + log1p(exp(-|z|))  (== torch.nn.functional.softplus)
    sp = jnp.maximum(acc, 0.0) + jnp.log1p(jnp.exp(-jnp.abs(acc)))
    # TODO(synk): could emit bf16 / pack two lane tiles into 8 sublanes to trim
    # the 4->8 sublane write padding if downstream tolerates it.
    o_ref[...] = sp.astype(o_ref.dtype)


def _round_up(x, m):
    return ((x + m - 1) // m) * m


def _split_outputs(sp_bo, lead):
    # sp_bo: (B, 4) softplus(linear) in batch-major layout; column slices are cheap.
    c0 = sp_bo[:, 0:2].reshape(*lead, 2)
    c1 = sp_bo[:, 2:4].reshape(*lead, 2)
    return {
        ("params", "strength", "concentration0"): c0,
        ("params", "strength", "concentration1"): c1,
    }


@functools.partial(jax.jit, static_argnames=("max_lane_tile", "use_pallas"))
def beta_extractor(latent, weight, bias, *, max_lane_tile=65536, use_pallas=None):
    """latent: (..., 8); weight: (4, 8) torch (out, in); bias: (4,).

    Returns a dict matching the PyTorch module's output keys; values (..., 2).
    """
    lead = latent.shape[:-1]
    assert latent.shape[-1] == _IN
    assert weight.shape == (_OUT, _IN) and bias.shape == (_OUT,)

    x2d = latent.reshape(-1, _IN).astype(jnp.float32)
    B = x2d.shape[0]
    w = weight.astype(jnp.float32)                     # (4, 8)
    bvec = bias.astype(jnp.float32)                    # (4,)

    if use_pallas is None:
        use_pallas = B >= _PALLAS_MIN_BATCH
    if not use_pallas:
        # Tiny batches: one fused XLA pass beats kernel launch + 128-lane padding.
        params = x2d @ w.T + bvec
        sp = jnp.logaddexp(0.0, params)                # softplus
        return _split_outputs(sp, lead)

    # ---- Pallas path: batch on lanes, lane-dense (4, TB) output blocks. ----
    b128 = _round_up(max(B, 1), _LANE)
    tb = min(_round_up(max_lane_tile, _LANE), b128)    # lane tile (multiple of 128)
    if b128 > _LANE and b128 // tb < 2:
        # Keep >=2 grid steps so the "parallel" axis can shard across v7x's two
        # TensorCores (and so a single giant tile never overruns 64 MiB VMEM).
        tb = max(_LANE, _round_up(b128 // 2, _LANE))
    b_pad = _round_up(max(B, 1), tb)

    # Transpose + pad producer. allow_input_fusion below lets XLA fuse this
    # into the pallas_call input rather than materializing it separately.
    x_t = jnp.pad(x2d.T, ((0, 0), (0, b_pad - B)))     # (8, b_pad)
    b2 = bvec.reshape(_OUT, 1)                         # (4, 1)

    # Double-buffered in+out VMEM for one step; raise the scoped-VMEM cap for
    # big tiles (v5e default is 16 MiB) but stay under v7x's 64 MiB per TC.
    vmem_needed = 2 * (_IN + _OUT) * tb * 4 + (1 << 20)
    vmem_limit = int(min(max(vmem_needed, 32 << 20), 64 << 20))

    out = pl.pallas_call(
        _beta_extractor_kernel,
        out_shape=jax.ShapeDtypeStruct((_OUT, b_pad), jnp.float32),
        grid=(b_pad // tb,),
        in_specs=[
            pl.BlockSpec((_IN, tb), lambda i: (0, i)),     # latent tile, pipelined
            pl.BlockSpec((_OUT, _IN), lambda i: (0, 0)),   # weight, resident
            pl.BlockSpec((_OUT, 1), lambda i: (0, 0)),     # bias, resident
        ],
        out_specs=pl.BlockSpec((_OUT, tb), lambda i: (0, i)),
        compiler_params=pltpu.CompilerParams(
            dimension_semantics=("parallel",),             # v7x megacore sharding
            allow_input_fusion=[True, False, False],       # fuse transpose+pad in
            vmem_limit_bytes=vmem_limit,
        ),
    )(x_t, w, b2)

    # Single (4, B) -> (B, 4) transpose, then cheap column slices.
    sp = out[:, :B].T
    return _split_outputs(sp, lead)


if __name__ == "__main__":
    key = jax.random.PRNGKey(0)
    k_x, k_w, k_b, k_x2 = jax.random.split(key, 4)

    # Deterministic "Linear(8, 4)" parameters (torch layout: weight (out, in), bias (out,)).
    bound = 1.0 / jnp.sqrt(8.0)
    weight = jax.random.uniform(k_w, (4, 8), minval=-bound, maxval=bound, dtype=jnp.float32)
    bias = jax.random.uniform(k_b, (4,), minval=-bound, maxval=bound, dtype=jnp.float32)

    def reference(latent):
        params = latent @ weight.T + bias
        sp = jnp.logaddexp(0.0, params)
        return sp[..., 0:2], sp[..., 2:4]

    def check(out, latent):
        c0_ref, c1_ref = reference(latent)
        assert jnp.allclose(out[("params", "strength", "concentration0")], c0_ref, atol=1e-5)
        assert jnp.allclose(out[("params", "strength", "concentration1")], c1_ref, atol=1e-5)

    # Small batch consistent with the module (batch=8, features=8).
    latent = jax.random.normal(k_x, (8, 8), dtype=jnp.float32)
    out = beta_extractor(latent, weight, bias, use_pallas=True)   # force kernel path
    jax.block_until_ready(out)
    check(out, latent)

    out_xla = beta_extractor(latent, weight, bias)                # auto -> fused XLA path
    jax.block_until_ready(out_xla)
    check(out_xla, latent)

    # Lane padding + a multi-step pipelined grid (3 tiles of 128 lanes).
    latent2 = jax.random.normal(k_x2, (300, 8), dtype=jnp.float32)
    out2 = beta_extractor(latent2, weight, bias, max_lane_tile=128, use_pallas=True)
    jax.block_until_ready(out2)
    check(out2, latent2)

    # Oversized-tile request gets capped to keep >=2 grid steps (v7x megacore).
    out3 = beta_extractor(latent2, weight, bias, use_pallas=True)
    jax.block_until_ready(out3)
    check(out3, latent2)

    print("KERNEL_OK")
</pallas_src>

<mosaic_0001>
module attributes {stable_mosaic.version = 11 : i64} {
  func.func @_beta_extractor_kernel(%arg0: i32, %arg1: memref<8x128xf32, #tpu.memory_space<vmem>>, %arg2: memref<4x8xf32, #tpu.memory_space<vmem>>, %arg3: memref<4x1xf32, #tpu.memory_space<vmem>>, %arg4: memref<4x128xf32, #tpu.memory_space<vmem>>) attributes {dimension_semantics = [#tpu.dimension_semantics<parallel>], iteration_bounds = array<i64: 1>, scalar_prefetch = 0 : i64, scratch_operands = 0 : i64, tpu.core_type = #tpu.core_type<tc>, window_params = [{transform_indices = @transform_0, window_bounds = array<i64: 8, 128>}, {pipeline_mode = #tpu.pipeline_mode<synchronous>, transform_indices = @transform_1, window_bounds = array<i64: 4, 8>}, {pipeline_mode = #tpu.pipeline_mode<synchronous>, transform_indices = @transform_2, window_bounds = array<i64: 4, 1>}, {transform_indices = @transform_3, window_bounds = array<i64: 4, 128>}]} {
    %c0 = arith.constant 0 : index
    %c0_0 = arith.constant 0 : index
    %0 = vector.load %arg1[%c0, %c0_0] : memref<8x128xf32, #tpu.memory_space<vmem>>, vector<8x128xf32>
    %c0_1 = arith.constant 0 : index
    %c0_2 = arith.constant 0 : index
    %1 = vector.load %arg2[%c0_1, %c0_2] : memref<4x8xf32, #tpu.memory_space<vmem>>, vector<4x8xf32>
    %c0_3 = arith.constant 0 : index
    %c0_4 = arith.constant 0 : index
    %2 = vector.load %arg3[%c0_3, %c0_4] : memref<4x1xf32, #tpu.memory_space<vmem>>, vector<4x1xf32>
    %3 = vector.extract_strided_slice %1 {offsets = [0, 0], sizes = [4, 1], strides = [1, 1]} : vector<4x8xf32> to vector<4x1xf32>
    %4 = vector.extract_strided_slice %0 {offsets = [0, 0], sizes = [1, 128], strides = [1, 1]} : vector<8x128xf32> to vector<1x128xf32>
    %5 = vector.broadcast %3 : vector<4x1xf32> to vector<4x128xf32>
    %6 = vector.broadcast %4 : vector<1x128xf32> to vector<4x128xf32>
    %7 = arith.mulf %5, %6 : vector<4x128xf32>
    %8 = vector.broadcast %2 : vector<4x1xf32> to vector<4x128xf32>
    %9 = arith.addf %7, %8 : vector<4x128xf32>
    %10 = vector.extract_strided_slice %1 {offsets = [0, 1], sizes = [4, 1], strides = [1, 1]} : vector<4x8xf32> to vector<4x1xf32>
    %11 = vector.extract_strided_slice %0 {offsets = [1, 0], sizes = [1, 128], strides = [1, 1]} : vector<8x128xf32> to vector<1x128xf32>
    %12 = vector.broadcast %10 : vector<4x1xf32> to vector<4x128xf32>
    %13 = vector.broadcast %11 : vector<1x128xf32> to vector<4x128xf32>
    %14 = arith.mulf %12, %13 : vector<4x128xf32>
    %15 = arith.addf %9, %14 : vector<4x128xf32>
    %16 = vector.extract_strided_slice %1 {offsets = [0, 2], sizes = [4, 1], strides = [1, 1]} : vector<4x8xf32> to vector<4x1xf32>
    %17 = vector.extract_strided_slice %0 {offsets = [2, 0], sizes = [1, 128], strides = [1, 1]} : vector<8x128xf32> to vector<1x128xf32>
    %18 = vector.broadcast %16 : vector<4x1xf32> to vector<4x128xf32>
    %19 = vector.broadcast %17 : vector<1x128xf32> to vector<4x128xf32>
    %20 = arith.mulf %18, %19 : vector<4x128xf32>
    %21 = arith.addf %15, %20 : vector<4x128xf32>
    %22 = vector.extract_strided_slice %1 {offsets = [0, 3], sizes = [4, 1], strides = [1, 1]} : vector<4x8xf32> to vector<4x1xf32>
    %23 = vector.extract_strided_slice %0 {offsets = [3, 0], sizes = [1, 128], strides = [1, 1]} : vector<8x128xf32> to vector<1x128xf32>
    %24 = vector.broadcast %22 : vector<4x1xf32> to vector<4x128xf32>
    %25 = vector.broadcast %23 : vector<1x128xf32> to vector<4x128xf32>
    %26 = arith.mulf %24, %25 : vector<4x128xf32>
    %27 = arith.addf %21, %26 : vector<4x128xf32>
    %28 = vector.extract_strided_slice %1 {offsets = [0, 4], sizes = [4, 1], strides = [1, 1]} : vector<4x8xf32> to vector<4x1xf32>
    %29 = vector.extract_strided_slice %0 {offsets = [4, 0], sizes = [1, 128], strides = [1, 1]} : vector<8x128xf32> to vector<1x128xf32>
    %30 = vector.broadcast %28 : vector<4x1xf32> to vector<4x128xf32>
    %31 = vector.broadcast %29 : vector<1x128xf32> to vector<4x128xf32>
    %32 = arith.mulf %30, %31 : vector<4x128xf32>
    %33 = arith.addf %27, %32 : vector<4x128xf32>
    %34 = vector.extract_strided_slice %1 {offsets = [0, 5], sizes = [4, 1], strides = [1, 1]} : vector<4x8xf32> to vector<4x1xf32>
    %35 = vector.extract_strided_slice %0 {offsets = [5, 0], sizes = [1, 128], strides = [1, 1]} : vector<8x128xf32> to vector<1x128xf32>
    %36 = vector.broadcast %34 : vector<4x1xf32> to vector<4x128xf32>
    %37 = vector.broadcast %35 : vector<1x128xf32> to vector<4x128xf32>
    %38 = arith.mulf %36, %37 : vector<4x128xf32>
    %39 = arith.addf %33, %38 : vector<4x128xf32>
    %40 = vector.extract_strided_slice %1 {offsets = [0, 6], sizes = [4, 1], strides = [1, 1]} : vector<4x8xf32> to vector<4x1xf32>
    %41 = vector.extract_strided_slice %0 {offsets = [6, 0], sizes = [1, 128], strides = [1, 1]} : vector<8x128xf32> to vector<1x128xf32>
    %42 = vector.broadcast %40 : vector<4x1xf32> to vector<4x128xf32>
    %43 = vector.broadcast %41 : vector<1x128xf32> to vector<4x128xf32>
    %44 = arith.mulf %42, %43 : vector<4x128xf32>
    %45 = arith.addf %39, %44 : vector<4x128xf32>
    %46 = vector.extract_strided_slice %1 {offsets = [0, 7], sizes = [4, 1], strides = [1, 1]} : vector<4x8xf32> to vector<4x1xf32>
    %47 = vector.extract_strided_slice %0 {offsets = [7, 0], sizes = [1, 128], strides = [1, 1]} : vector<8x128xf32> to vector<1x128xf32>
    %48 = vector.broadcast %46 : vector<4x1xf32> to vector<4x128xf32>
    %49 = vector.broadcast %47 : vector<1x128xf32> to vector<4x128xf32>
    %50 = arith.mulf %48, %49 : vector<4x128xf32>
    %51 = arith.addf %45, %50 : vector<4x128xf32>
    %cst = arith.constant 0.000000e+00 : f32
    %52 = vector.broadcast %cst : f32 to vector<4x128xf32>
    %53 = arith.maximumf %51, %52 : vector<4x128xf32>
    %54 = math.absf %51 : vector<4x128xf32>
    %cst_5 = arith.constant 0.000000e+00 : f32
    %55 = vector.broadcast %cst_5 : f32 to vector<4x128xf32>
    %56 = arith.subf %55, %54 : vector<4x128xf32>
    %57 = math.exp %56 : vector<4x128xf32>
    %58 = math.log1p %57 : vector<4x128xf32>
    %59 = arith.addf %53, %58 : vector<4x128xf32>
    %c0_6 = arith.constant 0 : index
    %c0_7 = arith.constant 0 : index
    %60 = vector.load %arg4[%c0_6, %c0_7] : memref<4x128xf32, #tpu.memory_space<vmem>>, vector<4x128xf32>
    tpu.vector_store %arg4[%c0_6, %c0_7], %59 {strides = array<i32>} : memref<4x128xf32, #tpu.memory_space<vmem>>, vector<4x128xf32>,
    return
  }
  func.func @transform_0(%arg0: i32) -> (i32, i32) {
    %c0_i32 = arith.constant 0 : i32
    %c0_i32_0 = arith.constant 0 : i32
    return %c0_i32, %arg0 : i32, i32
  }
  func.func @transform_1(%arg0: i32) -> (i32, i32) {
    %c0_i32 = arith.constant 0 : i32
    %c0_i32_0 = arith.constant 0 : i32
    %c0_i32_1 = arith.constant 0 : i32
    return %c0_i32, %c0_i32_0 : i32, i32
  }
  func.func @transform_2(%arg0: i32) -> (i32, i32) {
    %c0_i32 = arith.constant 0 : i32
    %c0_i32_0 = arith.constant 0 : i32
    %c0_i32_1 = arith.constant 0 : i32
    return %c0_i32, %c0_i32_0 : i32, i32
  }
  func.func @transform_3(%arg0: i32) -> (i32, i32) {
    %c0_i32 = arith.constant 0 : i32
    %c0_i32_0 = arith.constant 0 : i32
    return %c0_i32, %arg0 : i32, i32
  }
}

</mosaic_0001>

<llo_original>
// kernel: beta_extractor.2
$region0: #{beta_extractor.2}
  #allocation0 [shape = 'u32[]', space=smem, size = 0x4, offset = 0x4, fixed_abs, tag = 'smem constant byte address 0x4 - core index']
  #allocation1 [shape = 'u32[144,128]{1,0:T(1,128)}', space=vmem, size = 0x12000, scoped, tag = 'internal scratch']
  #allocation2 [shape = 'u32[2048]{0}', space=vmem, size = 0x2000, scoped, tag = 'scoped memory for beta_extractor.2']
  #allocation3 [shape = 'u32[2048]{0}', space=vmem, size = 0x2000, scoped, tag = 'scoped memory for beta_extractor.2']
  #allocation4 [shape = 'u32[2048]{0}', space=vmem, size = 0x2000, scoped, tag = 'scoped memory for beta_extractor.2']
  #allocation5 [shape = 'u32[2048]{0}', space=vmem, size = 0x2000, scoped, tag = 'scoped memory for beta_extractor.2']
  #allocation6 [shape = 'u32[2048]{0}', space=vmem, size = 0x2000, scoped, tag = 'scoped memory for beta_extractor.2']
  %s0 = inlined_call_operand.vmem [shape: f32[4,8], index: 0, kind: input, shape index: {}]
  %s1 = inlined_call_operand.vmem [shape: f32[4,1], index: 1, kind: input, shape index: {}]
  %s2 = inlined_call_operand.vmem [shape: f32[8,8], index: 2, kind: input, shape index: {}]
  %s3 = inlined_call_operand.<no memory space> [shape: f32[], index: 3, kind: input, shape index: {}]
  %s4 = inlined_call_operand.vmem [shape: f32[4,128], index: 4, kind: output, shape index: {}]
  %s5 = sld [smem:[#allocation0]]
  $region22: #{beta_extractor.2} parent=0
    _
  %s7 = ssub.s32 1, %s5
  %s8 = scalar_select 0, %s7, %s5
  %v9 = vstv %s3
  $region1: #{beta_extractor.2} parent=0
    #allocation7 [shape = 'u8[4096]{0}', space=vmem, size = 0x1000, dematerialized = true, scoped, tag = 'FusionAdapter Buffer %fusion.1 = f32[8,128]{1,0:T(8,128)} fusion(%param_2.1, %param_3), kind=kLoop, calls=%fused_computation.1.clone, metadata={op_name="jit(beta_extractor)/jit(_pad)/pad" stack_frame_id=8}']
    // Predicated region
    $region2: #{beta_extractor.2} parent=1 // pred_check
      _
    $region3: #{beta_extractor.2} parent=1 // pred_check_branch
      %11 = sbr.rel (0) target = $region5
    $region4: #{beta_extractor.2} parent=1 // pred_region
      _
    $region5: #{beta_extractor.2} parent=1 // pred_fallthru
      _
    // Predicated region
    $region6: #{beta_extractor.2} parent=1 // pred_check
      _
    $region7: #{beta_extractor.2} parent=1 // pred_check_branch
      %13 = sbr.rel (0) target = $region9
    $region8: #{beta_extractor.2} parent=1 // pred_region
      _
    $region9: #{beta_extractor.2} parent=1 // pred_fallthru
      _
    // Predicated region
    $region10: #{beta_extractor.2} parent=1 // pred_check
      _
    $region11: #{beta_extractor.2} parent=1 // pred_check_branch
      %15 = sbr.rel (0) target = $region13
    $region12: #{beta_extractor.2} parent=1 // pred_region
      _
    $region13: #{beta_extractor.2} parent=1 // pred_fallthru
      _
    %v16 = vld [vmem:[%s2] sm:$0xff]
    %v17 = vlaneseq
    %v18 = vand.u32 %v17, 127
    %vm20 = vcmp.lt.s32.totalorder %v18, 8
    %v21 = vsel %vm20, %v16, %v9
    %s23 = ssub.s32 256, 1
    %24 = vst [vmem:[#allocation7] sm:%s23] %v21
    %v25 = vld [vmem:[#allocation7] sm:$0xff]
    %v26 = vld [vmem:[%s0] sm:$0xf]
    %v27 = vld [vmem:[%s1] sm:$0xf]
    %29 = vset.pattern.permute.xlu0 0
    %30 = vperm.xlu0 %29, %v26
    %v31 = vpop.permute.xlu0 %30
    %v33 = vlaneseq
    %v34 = vshrl.u32 %v33, 7
    %v35 = vsub.s32 0, %v34
    %v36 = vrot.slane %v25, %v35
    %v37 = vmul.f32 %v31, %v36
    %39 = vset.pattern.permute.xlu0 0
    %40 = vperm.xlu0 %39, %v27
    %v41 = vpop.permute.xlu0 %40
    %v43 = vadd.f32 %v37, %v41
    %44 = vset.pattern.permute.xlu0 1
    %45 = vperm.xlu0 %44, %v26
    %v46 = vpop.permute.xlu0 %45
    %v48 = vlaneseq
    %v49 = vshrl.u32 %v48, 7
    %v50 = vsub.s32 1, %v49
    %v51 = vrot.slane %v25, %v50
    %v52 = vmul.f32 %v46, %v51
    %v53 = vadd.f32 %v43, %v52
    %54 = vset.pattern.permute.xlu0 2
    %55 = vperm.xlu0 %54, %v26
    %v56 = vpop.permute.xlu0 %55
    %v58 = vlaneseq
    %v59 = vshrl.u32 %v58, 7
    %v60 = vsub.s32 2, %v59
    %v61 = vrot.slane %v25, %v60
    %v62 = vmul.f32 %v56, %v61
    %v63 = vadd.f32 %v53, %v62
    %64 = vset.pattern.permute.xlu0 3
    %65 = vperm.xlu0 %64, %v26
    %v66 = vpop.permute.xlu0 %65
    %v68 = vlaneseq
    %v69 = vshrl.u32 %v68, 7
    %v70 = vsub.s32 3, %v69
    %v71 = vrot.slane %v25, %v70
    %v72 = vmul.f32 %v66, %v71
    %v73 = vadd.f32 %v63, %v72
    %74 = vset.pattern.permute.xlu0 4
    %75 = vperm.xlu0 %74, %v26
    %v76 = vpop.permute.xlu0 %75
    %v78 = vlaneseq
    %v79 = vshrl.u32 %v78, 7
    %v80 = vsub.s32 4, %v79
    %v81 = vrot.slane %v25, %v80
    %v82 = vmul.f32 %v76, %v81
    %v83 = vadd.f32 %v73, %v82
    %84 = vset.pattern.permute.xlu0 5
    %85 = vperm.xlu0 %84, %v26
    %v86 = vpop.permute.xlu0 %85
    %v88 = vlaneseq
    %v89 = vshrl.u32 %v88, 7
    %v90 = vsub.s32 5, %v89
    %v91 = vrot.slane %v25, %v90
    %v92 = vmul.f32 %v86, %v91
    %v93 = vadd.f32 %v83, %v92
    %94 = vset.pattern.permute.xlu0 6
    %95 = vperm.xlu0 %94, %v26
    %v96 = vpop.permute.xlu0 %95
    %v98 = vlaneseq
    %v99 = vshrl.u32 %v98, 7
    %v100 = vsub.s32 6, %v99
    %v101 = vrot.slane %v25, %v100
    %v102 = vmul.f32 %v96, %v101
    %v103 = vadd.f32 %v93, %v102
    %104 = vset.pattern.permute.xlu0 7
    %105 = vperm.xlu0 %104, %v26
    %v106 = vpop.permute.xlu0 %105
    %v108 = vlaneseq
    %v109 = vshrl.u32 %v108, 7
    %v110 = vsub.s32 7, %v109
    %v111 = vrot.slane %v25, %v110
    %v112 = vmul.f32 %v106, %v111
    %v113 = vadd.f32 %v103, %v112
    %v114 = vmax.f32 %v113, 0.0
    %v115 = vand.u32 2147483647, %v113
    %v116 = vsub.f32 0.0, %v115
    %v117 = vmul.f32 %v116, 1.442695
    %v118 = vpow.pop %v117
    %v119 = vadd.f32 %v118, 1.0
    %v120 = vlog2.pop %v119
    %v121 = vmul.f32 %v120, 0.6931472
    %v122 = vmul.f32 -0.5, %v118
    %v123 = vadd.f32 %v122, 1.0
    %v124 = vmul.f32 %v123, %v118
    %v125 = vand.u32 2147483647, %v118
    %vm126 = vcmp.lt.f32.partialorder %v125, 0.0004427343
    %v127 = vsel %vm126, %v124, %v121
    %v128 = vadd.f32 %v114, %v127
    %129 = vst [vmem:[%s4] sm:$0xf] %v128
    // Predicated region
    $region14: #{beta_extractor.2} parent=1 // pred_check
      _
    $region15: #{beta_extractor.2} parent=1 // pred_check_branch
      %131 = sbr.rel (0) target = $region17
    $region16: #{beta_extractor.2} parent=1 // pred_region
      _
    $region17: #{beta_extractor.2} parent=1 // pred_fallthru
      _
    // Predicated region
    $region18: #{beta_extractor.2} parent=1 // pred_check
      _
    $region19: #{beta_extractor.2} parent=1 // pred_check_branch
      %133 = sbr.rel (0) target = $region21
    $region20: #{beta_extractor.2} parent=1 // pred_region
      _
    $region21: #{beta_extractor.2} parent=1 // pred_fallthru
      _

</llo_original>
